<compile_context>
chip_gen: v7x
topology: tpu7x:2x2x1
jax: 0.10.0
libtpu: 0.0.40
codegen_flags: <defaults>
</compile_context>

<pallas_src>
import functools

import jax
import jax.numpy as jnp
from jax.experimental import pallas as pl
from jax.experimental.pallas import tpu as pltpu


def _pixel_weight_kernel(x_ref,
                         w1_ref, b1_ref,
                         w2_ref, b2_ref,
                         w3_ref, b3_ref,
                         w4_ref, b4_ref,
                         o_ref):
    # channels on sublanes, pixels on lanes
    x = x_ref[0]                                                      # (Cin, T)

    # layer 1: conv1x1(2C->128) (+ folded BN) + ReLU
    h = jnp.dot(w1_ref[...], x, preferred_element_type=jnp.float32)   # (128, T)
    h = jnp.maximum(h + b1_ref[...], 0.0)

    # layer 2: conv1x1(128->32) (+ folded BN) + ReLU
    h = jnp.dot(w2_ref[...], h, preferred_element_type=jnp.float32)   # (32, T)
    h = jnp.maximum(h + b2_ref[...], 0.0)

    # layer 3: conv1x1(32->8) (+ folded BN) + ReLU
    h = jnp.dot(w3_ref[...], h, preferred_element_type=jnp.float32)   # (8, T)
    h = jnp.maximum(h + b3_ref[...], 0.0)

    # layer 4: conv1x1(8->1) + ReLU, as a VPU multiply + 8-wide sublane reduce
    # (keeps the MXU free; an MXU matmul with N=1 is result-FIFO bound).
    y = jnp.sum(w4_ref[...] * h, axis=0, keepdims=True)               # (1, T)
    y = jnp.maximum(y + b4_ref[...], 0.0)

    o_ref[0] = y.astype(o_ref.dtype)


def pixel_weight_layer(x_nchw, folded_params, *, tile=2048):
    """x_nchw: (..., 2C, H, W) float32. Returns (B, 1, H, W)."""
    w1, b1, w2, b2, w3, b3, w4, b4 = folded_params
    Cin, H, W = x_nchw.shape[-3:]

    # x.view(-1, C, H, W) -> (B, Cin, H*W): pure reshape, no transpose needed
    # because pixels already trail the channel axis in NCHW.
    x = x_nchw.reshape(-1, Cin, H * W)
    B, _, HW = x.shape

    # Lane tile: multiple of 128, no larger than the 128-padded pixel count.
    tile = max(128, min(int(tile), pl.cdiv(HW, 128) * 128))
    tile = (tile // 128) * 128
    HW_pad = pl.cdiv(HW, tile) * tile
    if HW_pad != HW:
        x = jnp.pad(x, ((0, 0), (0, 0), (0, HW_pad - HW)))

    def const(a):
        return pl.BlockSpec(a.shape, lambda b, j: (0,) * a.ndim)

    grid = (B, HW_pad // tile)
    out = pl.pallas_call(
        _pixel_weight_kernel,
        out_shape=jax.ShapeDtypeStruct((B, 1, HW_pad), jnp.float32),
        grid_spec=pltpu.PrefetchScalarGridSpec(
            num_scalar_prefetch=0,
            grid=grid,
            in_specs=[
                pl.BlockSpec((1, Cin, tile), lambda b, j: (b, 0, j)),
                const(w1), const(b1),
                const(w2), const(b2),
                const(w3), const(b3),
                const(w4), const(b4),
            ],
            out_specs=pl.BlockSpec((1, 1, tile), lambda b, j: (b, 0, j)),
        ),
        compiler_params=pltpu.CompilerParams(
            dimension_semantics=("parallel", "parallel"),
        ),
    )(x, w1, b1, w2, b2, w3, b3, w4, b4)

    # (B, 1, HW_pad) -> (B, 1, H, W)
    return out[:, :, :HW].reshape(B, 1, H, W)


def make_raw_params(key, channel):
    """Synthetic parameters matching PixelWeightLayer(channel), PyTorch layout.

    Conv weights are (Cout, Cin) (1x1 kernels), biases (Cout,). Layers 1-3
    additionally carry BatchNorm (gamma, beta, running_mean, running_var, eps).
    """
    eps = 1e-5
    dims = [(2 * channel, 128), (128, 32), (32, 8), (8, 1)]
    layers = []
    for li, (cin, cout) in enumerate(dims):
        key, kw, kb, kg, kbe, km, kv = jax.random.split(key, 7)
        w = 0.1 * jax.random.normal(kw, (cout, cin), jnp.float32)
        b = 0.1 * jax.random.normal(kb, (cout,), jnp.float32)
        if li < 3:
            gamma = 1.0 + 0.1 * jax.random.normal(kg, (cout,), jnp.float32)
            beta = 0.1 * jax.random.normal(kbe, (cout,), jnp.float32)
            mean = 0.1 * jax.random.normal(km, (cout,), jnp.float32)
            var = jnp.abs(1.0 + 0.1 * jax.random.normal(kv, (cout,), jnp.float32))
            layers.append((w, b, (gamma, beta, mean, var, eps)))
        else:
            layers.append((w, b, None))
    return layers


def fold_params(raw):
    """Fold BN (eval) + conv bias into per-layer (W', b') — exact for inference.

    Kernel layout: W' is (Cout, Cin), b' is (Cout, 1); the final layer's
    weight is stored transposed as (Cin, 1) for the VPU reduce, its bias as (1, 1).
    """
    folded = []
    for li, (w, b, bn) in enumerate(raw):
        if bn is not None:
            gamma, beta, mean, var, eps = bn
            scale = gamma / jnp.sqrt(var + eps)
            wf = w * scale[:, None]
            bf = scale * (b - mean) + beta
        else:
            wf, bf = w, b
        if li < 3:
            folded += [wf, bf[:, None]]
        else:
            folded += [wf.T, bf.reshape(1, 1)]
    return tuple(folded)


def _reference(x_nchw, raw):
    """Pure-JAX reference mirroring the PyTorch module (conv1x1 -> BN -> ReLU)."""
    Cin, H, W = x_nchw.shape[-3:]
    h = x_nchw.reshape(-1, Cin, H, W)
    for (w, b, bn) in raw:
        h = jnp.einsum('oc,bchw->bohw', w, h) + b[None, :, None, None]
        if bn is not None:
            gamma, beta, mean, var, eps = bn
            inv = gamma / jnp.sqrt(var + eps)
            h = (h - mean[None, :, None, None]) * inv[None, :, None, None] \
                + beta[None, :, None, None]
        h = jnp.maximum(h, 0.0)
    return h


if __name__ == "__main__":
    key = jax.random.PRNGKey(0)
    k_x, k_p = jax.random.split(key)

    channel = 4                       # PixelWeightLayer(channel=4) -> input has 2*4=8 channels
    B, H, W = 2, 16, 16
    x = jax.random.normal(k_x, (B, 2 * channel, H, W), jnp.float32)

    raw = make_raw_params(k_p, channel)
    folded = fold_params(raw)

    run = jax.jit(functools.partial(pixel_weight_layer, tile=2048))
    y = run(x, folded)
    jax.block_until_ready(y)

    y_ref = _reference(x, raw)
    assert y.shape == (B, 1, H, W), y.shape
    max_err = float(jnp.max(jnp.abs(y - y_ref)))
    assert jnp.allclose(y, y_ref, atol=1e-4, rtol=1e-4), max_err

    print("KERNEL_OK")
</pallas_src>

<mosaic_0001>
module attributes {stable_mosaic.version = 11 : i64} {
  func.func @_pixel_weight_kernel(%arg0: i32, %arg1: i32, %arg2: memref<1x8x256xf32, #tpu.memory_space<vmem>>, %arg3: memref<128x8xf32, #tpu.memory_space<vmem>>, %arg4: memref<128x1xf32, #tpu.memory_space<vmem>>, %arg5: memref<32x128xf32, #tpu.memory_space<vmem>>, %arg6: memref<32x1xf32, #tpu.memory_space<vmem>>, %arg7: memref<8x32xf32, #tpu.memory_space<vmem>>, %arg8: memref<8x1xf32, #tpu.memory_space<vmem>>, %arg9: memref<8x1xf32, #tpu.memory_space<vmem>>, %arg10: memref<1x1xf32, #tpu.memory_space<vmem>>, %arg11: memref<1x1x256xf32, #tpu.memory_space<vmem>>) attributes {dimension_semantics = [#tpu.dimension_semantics<parallel>, #tpu.dimension_semantics<parallel>], iteration_bounds = array<i64: 2, 1>, scalar_prefetch = 0 : i64, scratch_operands = 0 : i64, tpu.core_type = #tpu.core_type<tc>, window_params = [{transform_indices = @transform_0, window_bounds = array<i64: 1, 8, 256>}, {pipeline_mode = #tpu.pipeline_mode<synchronous>, transform_indices = @transform_1, window_bounds = array<i64: 128, 8>}, {pipeline_mode = #tpu.pipeline_mode<synchronous>, transform_indices = @transform_2, window_bounds = array<i64: 128, 1>}, {pipeline_mode = #tpu.pipeline_mode<synchronous>, transform_indices = @transform_3, window_bounds = array<i64: 32, 128>}, {pipeline_mode = #tpu.pipeline_mode<synchronous>, transform_indices = @transform_4, window_bounds = array<i64: 32, 1>}, {pipeline_mode = #tpu.pipeline_mode<synchronous>, transform_indices = @transform_5, window_bounds = array<i64: 8, 32>}, {pipeline_mode = #tpu.pipeline_mode<synchronous>, transform_indices = @transform_6, window_bounds = array<i64: 8, 1>}, {pipeline_mode = #tpu.pipeline_mode<synchronous>, transform_indices = @transform_7, window_bounds = array<i64: 8, 1>}, {pipeline_mode = #tpu.pipeline_mode<synchronous>, transform_indices = @transform_8, window_bounds = array<i64: 1, 1>}, {transform_indices = @transform_9, window_bounds = array<i64: 1, 1, 256>}]} {
    %c0 = arith.constant 0 : index
    %c0_0 = arith.constant 0 : index
    %c0_1 = arith.constant 0 : index
    %0 = vector.load %arg2[%c0, %c0_0, %c0_1] : memref<1x8x256xf32, #tpu.memory_space<vmem>>, vector<1x8x256xf32>
    %1 = vector.shape_cast %0 : vector<1x8x256xf32> to vector<8x256xf32>
    %c0_2 = arith.constant 0 : index
    %c0_3 = arith.constant 0 : index
    %2 = vector.load %arg3[%c0_2, %c0_3] : memref<128x8xf32, #tpu.memory_space<vmem>>, vector<128x8xf32>
    %cst = arith.constant dense<0.000000e+00> : vector<128x256xf32>
    %3 = tpu.matmul %2, %1, %cst {dimension_numbers = #tpu.dot_dimension_numbers<[1], [0], [0], [1], [0, 0, 1, 1], [], []>} : vector<128x8xf32>, vector<8x256xf32>, vector<128x256xf32> -> vector<128x256xf32>
    %c0_4 = arith.constant 0 : index
    %c0_5 = arith.constant 0 : index
    %4 = vector.load %arg4[%c0_4, %c0_5] : memref<128x1xf32, #tpu.memory_space<vmem>>, vector<128x1xf32>
    %5 = vector.broadcast %4 : vector<128x1xf32> to vector<128x256xf32>
    %6 = arith.addf %3, %5 : vector<128x256xf32>
    %cst_6 = arith.constant 0.000000e+00 : f32
    %7 = vector.broadcast %cst_6 : f32 to vector<128x256xf32>
    %8 = arith.maximumf %6, %7 : vector<128x256xf32>
    %c0_7 = arith.constant 0 : index
    %c0_8 = arith.constant 0 : index
    %9 = vector.load %arg5[%c0_7, %c0_8] : memref<32x128xf32, #tpu.memory_space<vmem>>, vector<32x128xf32>
    %cst_9 = arith.constant dense<0.000000e+00> : vector<32x256xf32>
    %10 = tpu.matmul %9, %8, %cst_9 {dimension_numbers = #tpu.dot_dimension_numbers<[1], [0], [0], [1], [0, 0, 1, 1], [], []>} : vector<32x128xf32>, vector<128x256xf32>, vector<32x256xf32> -> vector<32x256xf32>
    %c0_10 = arith.constant 0 : index
    %c0_11 = arith.constant 0 : index
    %11 = vector.load %arg6[%c0_10, %c0_11] : memref<32x1xf32, #tpu.memory_space<vmem>>, vector<32x1xf32>
    %12 = vector.broadcast %11 : vector<32x1xf32> to vector<32x256xf32>
    %13 = arith.addf %10, %12 : vector<32x256xf32>
    %cst_12 = arith.constant 0.000000e+00 : f32
    %14 = vector.broadcast %cst_12 : f32 to vector<32x256xf32>
    %15 = arith.maximumf %13, %14 : vector<32x256xf32>
    %c0_13 = arith.constant 0 : index
    %c0_14 = arith.constant 0 : index
    %16 = vector.load %arg7[%c0_13, %c0_14] : memref<8x32xf32, #tpu.memory_space<vmem>>, vector<8x32xf32>
    %cst_15 = arith.constant dense<0.000000e+00> : vector<8x256xf32>
    %17 = tpu.matmul %16, %15, %cst_15 {dimension_numbers = #tpu.dot_dimension_numbers<[1], [0], [0], [1], [0, 0, 1, 1], [], []>} : vector<8x32xf32>, vector<32x256xf32>, vector<8x256xf32> -> vector<8x256xf32>
    %c0_16 = arith.constant 0 : index
    %c0_17 = arith.constant 0 : index
    %18 = vector.load %arg8[%c0_16, %c0_17] : memref<8x1xf32, #tpu.memory_space<vmem>>, vector<8x1xf32>
    %19 = vector.broadcast %18 : vector<8x1xf32> to vector<8x256xf32>
    %20 = arith.addf %17, %19 : vector<8x256xf32>
    %cst_18 = arith.constant 0.000000e+00 : f32
    %21 = vector.broadcast %cst_18 : f32 to vector<8x256xf32>
    %22 = arith.maximumf %20, %21 : vector<8x256xf32>
    %c0_19 = arith.constant 0 : index
    %c0_20 = arith.constant 0 : index
    %23 = vector.load %arg9[%c0_19, %c0_20] : memref<8x1xf32, #tpu.memory_space<vmem>>, vector<8x1xf32>
    %24 = vector.broadcast %23 : vector<8x1xf32> to vector<8x256xf32>
    %25 = arith.mulf %24, %22 : vector<8x256xf32>
    %cst_21 = arith.constant dense<0.000000e+00> : vector<256xf32>
    %26 = vector.multi_reduction <add>, %25, %cst_21 [0] : vector<8x256xf32> to vector<256xf32>
    %27 = vector.shape_cast %26 : vector<256xf32> to vector<1x256xf32>
    %c0_22 = arith.constant 0 : index
    %c0_23 = arith.constant 0 : index
    %28 = vector.load %arg10[%c0_22, %c0_23] : memref<1x1xf32, #tpu.memory_space<vmem>>, vector<1x1xf32>
    %29 = vector.broadcast %28 : vector<1x1xf32> to vector<1x256xf32>
    %30 = arith.addf %27, %29 : vector<1x256xf32>
    %cst_24 = arith.constant 0.000000e+00 : f32
    %31 = vector.broadcast %cst_24 : f32 to vector<1x256xf32>
    %32 = arith.maximumf %30, %31 : vector<1x256xf32>
    %c0_25 = arith.constant 0 : index
    %c0_26 = arith.constant 0 : index
    %c0_27 = arith.constant 0 : index
    %33 = vector.load %arg11[%c0_25, %c0_26, %c0_27] : memref<1x1x256xf32, #tpu.memory_space<vmem>>, vector<1x1x256xf32>
    %34 = vector.shape_cast %33 : vector<1x1x256xf32> to vector<1x256xf32>
    %35 = vector.shape_cast %32 : vector<1x256xf32> to vector<1x1x256xf32>
    tpu.vector_store %arg11[%c0_25, %c0_26, %c0_27], %35 {strides = array<i32>} : memref<1x1x256xf32, #tpu.memory_space<vmem>>, vector<1x1x256xf32>,
    return
  }
  func.func @transform_0(%arg0: i32, %arg1: i32) -> (i32, i32, i32) {
    %c0_i32 = arith.constant 0 : i32
    %c0_i32_0 = arith.constant 0 : i32
    return %arg0, %c0_i32, %arg1 : i32, i32, i32
  }
  func.func @transform_1(%arg0: i32, %arg1: i32) -> (i32, i32) {
    %c0_i32 = arith.constant 0 : i32
    %c0_i32_0 = arith.constant 0 : i32
    %c0_i32_1 = arith.constant 0 : i32
    return %c0_i32, %c0_i32_0 : i32, i32
  }
  func.func @transform_2(%arg0: i32, %arg1: i32) -> (i32, i32) {
    %c0_i32 = arith.constant 0 : i32
    %c0_i32_0 = arith.constant 0 : i32
    %c0_i32_1 = arith.constant 0 : i32
    return %c0_i32, %c0_i32_0 : i32, i32
  }
  func.func @transform_3(%arg0: i32, %arg1: i32) -> (i32, i32) {
    %c0_i32 = arith.constant 0 : i32
    %c0_i32_0 = arith.constant 0 : i32
    %c0_i32_1 = arith.constant 0 : i32
    return %c0_i32, %c0_i32_0 : i32, i32
  }
  func.func @transform_4(%arg0: i32, %arg1: i32) -> (i32, i32) {
    %c0_i32 = arith.constant 0 : i32
    %c0_i32_0 = arith.constant 0 : i32
    %c0_i32_1 = arith.constant 0 : i32
    return %c0_i32, %c0_i32_0 : i32, i32
  }
  func.func @transform_5(%arg0: i32, %arg1: i32) -> (i32, i32) {
    %c0_i32 = arith.constant 0 : i32
    %c0_i32_0 = arith.constant 0 : i32
    %c0_i32_1 = arith.constant 0 : i32
    return %c0_i32, %c0_i32_0 : i32, i32
  }
  func.func @transform_6(%arg0: i32, %arg1: i32) -> (i32, i32) {
    %c0_i32 = arith.constant 0 : i32
    %c0_i32_0 = arith.constant 0 : i32
    %c0_i32_1 = arith.constant 0 : i32
    return %c0_i32, %c0_i32_0 : i32, i32
  }
  func.func @transform_7(%arg0: i32, %arg1: i32) -> (i32, i32) {
    %c0_i32 = arith.constant 0 : i32
    %c0_i32_0 = arith.constant 0 : i32
    %c0_i32_1 = arith.constant 0 : i32
    return %c0_i32, %c0_i32_0 : i32, i32
  }
  func.func @transform_8(%arg0: i32, %arg1: i32) -> (i32, i32) {
    %c0_i32 = arith.constant 0 : i32
    %c0_i32_0 = arith.constant 0 : i32
    %c0_i32_1 = arith.constant 0 : i32
    return %c0_i32, %c0_i32_0 : i32, i32
  }
  func.func @transform_9(%arg0: i32, %arg1: i32) -> (i32, i32, i32) {
    %c0_i32 = arith.constant 0 : i32
    %c0_i32_0 = arith.constant 0 : i32
    return %arg0, %c0_i32, %arg1 : i32, i32, i32
  }
}

</mosaic_0001>

<llo_original>
// kernel: pixel_weight_layer.1
$region0: #{pixel_weight_layer.1}
  #allocation0 [shape = 'u32[]', space=smem, size = 0x4, offset = 0x4, fixed_abs, tag = 'smem constant byte address 0x4 - core index']
  #allocation1 [shape = 'u32[144,128]{1,0:T(1,128)}', space=vmem, size = 0x12000, scoped, tag = 'internal scratch']
  #allocation2 [shape = 'f32[1,1]{1,0:T(1,128)S(1)}', space=vmem, size = 0x200, scoped, tag = 'scoped memory for pixel_weight_layer.1']
  %s0 = inlined_call_operand.vmem [shape: f32[2,8,256], index: 0, kind: input, shape index: {}]
  %s1 = inlined_call_operand.vmem [shape: f32[128,8], index: 1, kind: input, shape index: {}]
  %s2 = inlined_call_operand.vmem [shape: f32[128,1], index: 2, kind: input, shape index: {}]
  %s3 = inlined_call_operand.vmem [shape: f32[32,128], index: 3, kind: input, shape index: {}]
  %s4 = inlined_call_operand.vmem [shape: f32[32,1], index: 4, kind: input, shape index: {}]
  %s5 = inlined_call_operand.vmem [shape: f32[8,32], index: 5, kind: input, shape index: {}]
  %s6 = inlined_call_operand.vmem [shape: f32[8,1], index: 6, kind: input, shape index: {}]
  %s7 = inlined_call_operand.vmem [shape: f32[8,1], index: 7, kind: input, shape index: {}]
  %s8 = inlined_call_operand.<no memory space> [shape: f32[1,1], index: 8, kind: input, shape index: {}]
  %s9 = inlined_call_operand.vmem [shape: f32[2,1,256], index: 9, kind: output, shape index: {}]
  %s10 = sld [smem:[#allocation0]]
  $region69: #{pixel_weight_layer.1} parent=0
    _
  %s12 = ssub.s32 1, %s10
  %s13 = scalar_select 0, %s12, %s10
  %v14 = vstv %s8
  %15 = vst [vmem:[#allocation2] sm:$0x1] %v14
  loop: start=0, step=1, limit=4
  $region2: #{pixel_weight_layer.1} parent=0 // loop_pre_header
    _
  $region3: #{pixel_weight_layer.1} parent=0 // loop_header
    %s17 = sphi 0, %s21
    %p18 = scmp.ge.s32.totalorder %s17, 4
    %s24 = sphi 0, %s36
    %s25 = sphi 0, %s32
    %s26 = sphi 0, %s24
    %s27 = sphi 0, %s25
    %s28 = sphi 0, %s26
    %s29 = sphi 0, %s27
    %s41 = sphi 0, %s43
    %s44 = sphi 0, %s41
    %s45 = sphi 0, %s44
    %s61 = sphi 0, %s45
    %s65 = sphi 0, %s65
    %s67 = sphi 0, %s65
    %s68 = sphi 0, %s67
    %s82 = sphi 0, %s68
    %s86 = sphi 0, %s86
    %s88 = sphi 0, %s86
    %s89 = sphi 0, %s88
    %s103 = sphi 0, %s89
    %s107 = sphi 0, %s107
    %s109 = sphi 0, %s107
    %s110 = sphi 0, %s109
    %s124 = sphi 0, %s110
    %s128 = sphi 0, %s128
    %s130 = sphi 0, %s128
    %s131 = sphi 0, %s130
    %s145 = sphi 0, %s131
    %s149 = sphi 0, %s149
    %s151 = sphi 0, %s149
    %s152 = sphi 0, %s151
    %s166 = sphi 0, %s152
    %s170 = sphi 0, %s170
    %s172 = sphi 0, %s170
    %s173 = sphi 0, %s172
    %s187 = sphi 0, %s173
    %s191 = sphi 0, %s191
    %s193 = sphi 0, %s191
    %s194 = sphi 0, %s193
    %s208 = sphi 0, %s194
    %s212 = sphi 0, %s212
    %s214 = sphi 0, %s212
    %s215 = sphi 0, %s214
    %s229 = sphi 0, %s215
    %s237 = sphi 0, %s239
    %s240 = sphi 0, %s237
    %s241 = sphi 0, %s240
    %s257 = sphi 0, %s241
  $region4: #{pixel_weight_layer.1} parent=0 // loop_header_branch
    %20 = sbr.rel (%p18) target = $region8
  $region5: #{pixel_weight_layer.1} parent=0 // loop_body
    %s22 = ssub.s32 %s17, 1
    %s23 = ssub.s32 %s17, 2
    %s30 = sadd.s32 1, %s25
    %p31 = scmp.ge.s32.totalorder %s30, 1
    %s32 = scalar_select %p31, 0, %s30
    %s33 = sadd.s32 1, %s24
    %s34 = scalar_select %p31, %s33, %s24
    %p35 = scmp.ge.s32.totalorder %s34, 2
    %s36 = scalar_select %p35, 0, %s34
    %s37 = ssub.s32 %s24, %s36
    %s38 = ssub.s32 %s25, %s32
    %s39 = sor.u32 %s37, %s38
    %p40 = scmp.eq.s32.totalorder %s39, 0
    %s42 = sadd.s32 %s41, 1
    %s43 = scalar_select %p40, %s41, %s42
    %p46 = pneg %p40
    %p47 = scmp.eq.s32.totalorder %s17, 1
    %p48 = por %p46, %p47
    %p49 = scmp.ne.s32.totalorder %s41, %s44
    %p50 = scmp.eq.s32.totalorder %s17, 0
    %p51 = por %p49, %p50
    %p52 = scmp.ne.s32.totalorder %s41, %s44
    %p53 = scmp.eq.s32.totalorder %s22, 1
    %p54 = por %p52, %p53
    %p55 = scmp.ne.s32.totalorder %s44, %s45
    %p56 = scmp.eq.s32.totalorder %s22, 0
    %p57 = por %p55, %p56
    %p58 = scmp.ne.s32.totalorder %s44, %s45
    %p59 = scmp.eq.s32.totalorder %s23, 1
    %p60 = por %p58, %p59
    %p62 = scmp.ne.s32.totalorder %s45, %s61
    %p63 = scmp.eq.s32.totalorder %s23, 0
    %p64 = por %p62, %p63
    %s66 = sadd.s32 %s65, 1
    %p69 = scmp.eq.s32.totalorder %s17, 1
    %p70 = scmp.ne.s32.totalorder %s65, %s67
    %p71 = scmp.eq.s32.totalorder %s17, 0
    %p72 = por %p70, %p71
    %p73 = scmp.ne.s32.totalorder %s65, %s67
    %p74 = scmp.eq.s32.totalorder %s22, 1
    %p75 = por %p73, %p74
    %p76 = scmp.ne.s32.totalorder %s67, %s68
    %p77 = scmp.eq.s32.totalorder %s22, 0
    %p78 = por %p76, %p77
    %p79 = scmp.ne.s32.totalorder %s67, %s68
    %p80 = scmp.eq.s32.totalorder %s23, 1
    %p81 = por %p79, %p80
    %p83 = scmp.ne.s32.totalorder %s68, %s82
    %p84 = scmp.eq.s32.totalorder %s23, 0
    %p85 = por %p83, %p84
    %s87 = sadd.s32 %s86, 1
    %p90 = scmp.eq.s32.totalorder %s17, 1
    %p91 = scmp.ne.s32.totalorder %s86, %s88
    %p92 = scmp.eq.s32.totalorder %s17, 0
    %p93 = por %p91, %p92
    %p94 = scmp.ne.s32.totalorder %s86, %s88
    %p95 = scmp.eq.s32.totalorder %s22, 1
    %p96 = por %p94, %p95
    %p97 = scmp.ne.s32.totalorder %s88, %s89
    %p98 = scmp.eq.s32.totalorder %s22, 0
    %p99 = por %p97, %p98
    %p100 = scmp.ne.s32.totalorder %s88, %s89
    %p101 = scmp.eq.s32.totalorder %s23, 1
    %p102 = por %p100, %p101
    %p104 = scmp.ne.s32.totalorder %s89, %s103
    %p105 = scmp.eq.s32.totalorder %s23, 0
    %p106 = por %p104, %p105
    %s108 = sadd.s32 %s107, 1
    %p111 = scmp.eq.s32.totalorder %s17, 1
    %p112 = scmp.ne.s32.totalorder %s107, %s109
    %p113 = scmp.eq.s32.totalorder %s17, 0
    %p114 = por %p112, %p113
    %p115 = scmp.ne.s32.totalorder %s107, %s109
    %p116 = scmp.eq.s32.totalorder %s22, 1
    %p117 = por %p115, %p116
    %p118 = scmp.ne.s32.totalorder %s109, %s110
    %p119 = scmp.eq.s32.totalorder %s22, 0
    %p120 = por %p118, %p119
    %p121 = scmp.ne.s32.totalorder %s109, %s110
    %p122 = scmp.eq.s32.totalorder %s23, 1
    %p123 = por %p121, %p122
    %p125 = scmp.ne.s32.totalorder %s110, %s124
    %p126 = scmp.eq.s32.totalorder %s23, 0
    %p127 = por %p125, %p126
    %s129 = sadd.s32 %s128, 1
    %p132 = scmp.eq.s32.totalorder %s17, 1
    %p133 = scmp.ne.s32.totalorder %s128, %s130
    %p134 = scmp.eq.s32.totalorder %s17, 0
    %p135 = por %p133, %p134
    %p136 = scmp.ne.s32.totalorder %s128, %s130
    %p137 = scmp.eq.s32.totalorder %s22, 1
    %p138 = por %p136, %p137
    %p139 = scmp.ne.s32.totalorder %s130, %s131
    %p140 = scmp.eq.s32.totalorder %s22, 0
    %p141 = por %p139, %p140
    %p142 = scmp.ne.s32.totalorder %s130, %s131
    %p143 = scmp.eq.s32.totalorder %s23, 1
    %p144 = por %p142, %p143
    %p146 = scmp.ne.s32.totalorder %s131, %s145
    %p147 = scmp.eq.s32.totalorder %s23, 0
    %p148 = por %p146, %p147
    %s150 = sadd.s32 %s149, 1
    %p153 = scmp.eq.s32.totalorder %s17, 1
    %p154 = scmp.ne.s32.totalorder %s149, %s151
    %p155 = scmp.eq.s32.totalorder %s17, 0
    %p156 = por %p154, %p155
    %p157 = scmp.ne.s32.totalorder %s149, %s151
    %p158 = scmp.eq.s32.totalorder %s22, 1
    %p159 = por %p157, %p158
    %p160 = scmp.ne.s32.totalorder %s151, %s152
    %p161 = scmp.eq.s32.totalorder %s22, 0
    %p162 = por %p160, %p161
    %p163 = scmp.ne.s32.totalorder %s151, %s152
    %p164 = scmp.eq.s32.totalorder %s23, 1
    %p165 = por %p163, %p164
    %p167 = scmp.ne.s32.totalorder %s152, %s166
    %p168 = scmp.eq.s32.totalorder %s23, 0
    %p169 = por %p167, %p168
    %s171 = sadd.s32 %s170, 1
    %p174 = scmp.eq.s32.totalorder %s17, 1
    %p175 = scmp.ne.s32.totalorder %s170, %s172
    %p176 = scmp.eq.s32.totalorder %s17, 0
    %p177 = por %p175, %p176
    %p178 = scmp.ne.s32.totalorder %s170, %s172
    %p179 = scmp.eq.s32.totalorder %s22, 1
    %p180 = por %p178, %p179
    %p181 = scmp.ne.s32.totalorder %s172, %s173
    %p182 = scmp.eq.s32.totalorder %s22, 0
    %p183 = por %p181, %p182
    %p184 = scmp.ne.s32.totalorder %s172, %s173
    %p185 = scmp.eq.s32.totalorder %s23, 1
    %p186 = por %p184, %p185
    %p188 = scmp.ne.s32.totalorder %s173, %s187
    %p189 = scmp.eq.s32.totalorder %s23, 0
    %p190 = por %p188, %p189
    %s192 = sadd.s32 %s191, 1
    %p195 = scmp.eq.s32.totalorder %s17, 1
    %p196 = scmp.ne.s32.totalorder %s191, %s193
    %p197 = scmp.eq.s32.totalorder %s17, 0
    %p198 = por %p196, %p197
    %p199 = scmp.ne.s32.totalorder %s191, %s193
    %p200 = scmp.eq.s32.totalorder %s22, 1
    %p201 = por %p199, %p200
    %p202 = scmp.ne.s32.totalorder %s193, %s194
    %p203 = scmp.eq.s32.totalorder %s22, 0
    %p204 = por %p202, %p203
    %p205 = scmp.ne.s32.totalorder %s193, %s194
    %p206 = scmp.eq.s32.totalorder %s23, 1
    %p207 = por %p205, %p206
    %p209 = scmp.ne.s32.totalorder %s194, %s208
    %p210 = scmp.eq.s32.totalorder %s23, 0
    %p211 = por %p209, %p210
    %s213 = sadd.s32 %s212, 1
    %p216 = scmp.eq.s32.totalorder %s17, 1
    %p217 = scmp.ne.s32.totalorder %s212, %s214
    %p218 = scmp.eq.s32.totalorder %s17, 0
    %p219 = por %p217, %p218
    %p220 = scmp.ne.s32.totalorder %s212, %s214
    %p221 = scmp.eq.s32.totalorder %s22, 1
    %p222 = por %p220, %p221
    %p223 = scmp.ne.s32.totalorder %s214, %s215
    %p224 = scmp.eq.s32.totalorder %s22, 0
    %p225 = por %p223, %p224
    %p226 = scmp.ne.s32.totalorder %s214, %s215
    %p227 = scmp.eq.s32.totalorder %s23, 1
    %p228 = por %p226, %p227
    %p230 = scmp.ne.s32.totalorder %s215, %s229
    %p231 = scmp.eq.s32.totalorder %s23, 0
    %p232 = por %p230, %p231
    %s233 = ssub.s32 %s24, %s36
    %s234 = ssub.s32 %s25, %s32
    %s235 = sor.u32 %s233, %s234
    %p236 = scmp.eq.s32.totalorder %s235, 0
    %s238 = sadd.s32 %s237, 1
    %s239 = scalar_select %p236, %s237, %s238
    %p242 = pneg %p236
    %p243 = scmp.eq.s32.totalorder %s17, 1
    %p244 = por %p242, %p243
    %p245 = scmp.ne.s32.totalorder %s237, %s240
    %p246 = scmp.eq.s32.totalorder %s17, 0
    %p247 = por %p245, %p246
    %p248 = scmp.ne.s32.totalorder %s237, %s240
    %p249 = scmp.eq.s32.totalorder %s22, 1
    %p250 = por %p248, %p249
    %p251 = scmp.ne.s32.totalorder %s240, %s241
    %p252 = scmp.eq.s32.totalorder %s22, 0
    %p253 = por %p251, %p252
    %p254 = scmp.ne.s32.totalorder %s240, %s241
    %p255 = scmp.eq.s32.totalorder %s23, 1
    %p256 = por %p254, %p255
    %p258 = scmp.ne.s32.totalorder %s241, %s257
    %p259 = scmp.eq.s32.totalorder %s23, 0
    %p260 = por %p258, %p259
    %p261 = scmp.le.s32.totalorder 1, %s17
    %p262 = scmp.lt.s32.totalorder %s17, 3
    %p263 = pnand %p261, %p262
    %p264 = pneg %p263
    // Predicated region
    $region9: #{pixel_weight_layer.1} parent=5 // pred_check
      _
    $region10: #{pixel_weight_layer.1} parent=5 // pred_check_branch
      %266 = sbr.rel (%p263) target = $region12
    $region11: #{pixel_weight_layer.1} parent=5 // pred_region
      %s267 = ssub.s32 %s17, 1
      // Predicated region
      $region13: #{pixel_weight_layer.1} parent=11 // pred_check
        %p268 = pneg %p78
      $region14: #{pixel_weight_layer.1} parent=11 // pred_check_branch
        %270 = sbr.rel (%p268) target = $region16
      $region15: #{pixel_weight_layer.1} parent=11 // pred_region
        _
      $region16: #{pixel_weight_layer.1} parent=11 // pred_fallthru
        _
      // Predicated region
      $region17: #{pixel_weight_layer.1} parent=11 // pred_check
        %p271 = pneg %p99
      $region18: #{pixel_weight_layer.1} parent=11 // pred_check_branch
        %273 = sbr.rel (%p271) target = $region20
      $region19: #{pixel_weight_layer.1} parent=11 // pred_region
        _
      $region20: #{pixel_weight_layer.1} parent=11 // pred_fallthru
        _
      // Predicated region
      $region21: #{pixel_weight_layer.1} parent=11 // pred_check
        %p274 = pneg %p120
      $region22: #{pixel_weight_layer.1} parent=11 // pred_check_branch
        %276 = sbr.rel (%p274) target = $region24
      $region23: #{pixel_weight_layer.1} parent=11 // pred_region
        _
      $region24: #{pixel_weight_layer.1} parent=11 // pred_fallthru
        _
      // Predicated region
      $region25: #{pixel_weight_layer.1} parent=11 // pred_check
        %p277 = pneg %p141
      $region26: #{pixel_weight_layer.1} parent=11 // pred_check_branch
        %279 = sbr.rel (%p277) target = $region28
      $region27: #{pixel_weight_layer.1} parent=11 // pred_region
        _
      $region28: #{pixel_weight_layer.1} parent=11 // pred_fallthru
        _
      // Predicated region
      $region29: #{pixel_weight_layer.1} parent=11 // pred_check
        %p280 = pneg %p162
      $region30: #{pixel_weight_layer.1} parent=11 // pred_check_branch
        %282 = sbr.rel (%p280) target = $region32
      $region31: #{pixel_weight_layer.1} parent=11 // pred_region
        _
      $region32: #{pixel_weight_layer.1} parent=11 // pred_fallthru
        _
      // Predicated region
      $region33: #{pixel_weight_layer.1} parent=11 // pred_check
        %p283 = pneg %p183
      $region34: #{pixel_weight_layer.1} parent=11 // pred_check_branch
        %285 = sbr.rel (%p283) target = $region36
      $region35: #{pixel_weight_layer.1} parent=11 // pred_region
        _
      $region36: #{pixel_weight_layer.1} parent=11 // pred_fallthru
        _
      // Predicated region
      $region37: #{pixel_weight_layer.1} parent=11 // pred_check
        %p286 = pneg %p204
      $region38: #{pixel_weight_layer.1} parent=11 // pred_check_branch
        %288 = sbr.rel (%p286) target = $region40
      $region39: #{pixel_weight_layer.1} parent=11 // pred_region
        _
      $region40: #{pixel_weight_layer.1} parent=11 // pred_fallthru
        _
      // Predicated region
      $region41: #{pixel_weight_layer.1} parent=11 // pred_check
        %p289 = pneg %p225
      $region42: #{pixel_weight_layer.1} parent=11 // pred_check_branch
        %291 = sbr.rel (%p289) target = $region44
      $region43: #{pixel_weight_layer.1} parent=11 // pred_region
        _
      $region44: #{pixel_weight_layer.1} parent=11 // pred_fallthru
        _
    $region12: #{pixel_weight_layer.1} parent=5 // pred_fallthru
      _
    %p292 = scmp.lt.s32.totalorder %s17, 2
    // Predicated region
    $region45: #{pixel_weight_layer.1} parent=5 // pred_check
      %p293 = pneg %p292
    $region46: #{pixel_weight_layer.1} parent=5 // pred_check_branch
      %295 = sbr.rel (%p293) target = $region48
    $region47: #{pixel_weight_layer.1} parent=5 // pred_region
      // Predicated region
      $region49: #{pixel_weight_layer.1} parent=47 // pred_check
        %p296 = pneg %p51
      $region50: #{pixel_weight_layer.1} parent=47 // pred_check_branch
        %298 = sbr.rel (%p296) target = $region52
      $region51: #{pixel_weight_layer.1} parent=47 // pred_region
        %s299 = smul.u32 2, %s25
        %p300 = scmp.lt.s32.totalorder %s24, 1
        %s301 = scalar_select %p300, %s24, 1
        %p302 = scmp.lt.s32.totalorder %s299, 1
        %s303 = scalar_select %p302, %s299, 1
        %s304 = smul.addr %s301, 2
        %s305 = sadd.s32 %s303, %s304
        %s306 = smul.addr %s305, 8
        %s307 = scalar_lea.vmem %s0, %s306
        %s308 = smul.u32 2, %s25
      $region52: #{pixel_weight_layer.1} parent=47 // pred_fallthru
        _
    $region48: #{pixel_weight_layer.1} parent=5 // pred_fallthru
      _
    %p309 = scmp.le.s32.totalorder 1, %s17
    %p310 = scmp.lt.s32.totalorder %s17, 3
    %p311 = pnand %p309, %p310
    %p312 = pneg %p311
    // Predicated region
    $region53: #{pixel_weight_layer.1} parent=5 // pred_check
      _
    $region54: #{pixel_weight_layer.1} parent=5 // pred_check_branch
      %314 = sbr.rel (%p311) target = $region56
    $region55: #{pixel_weight_layer.1} parent=5 // pred_region
      %s315 = ssub.s32 %s17, 1
      %s316 = smul.u32 2, %s27
      %p317 = scmp.lt.s32.totalorder %s26, 1
      %s318 = scalar_select %p317, %s26, 1
      %p319 = scmp.lt.s32.totalorder %s316, 1
      %s320 = scalar_select %p319, %s316, 1
      %s321 = smul.addr %s318, 2
      %s322 = sadd.s32 %s320, %s321
      %s323 = smul.addr %s322, 8
      %s324 = scalar_lea.vmem %s0, %s323
      %p325 = pneg %p57
      %p326 = pneg %p54
      %p327 = pneg %p78
      %p328 = pneg %p75
      %p329 = pneg %p99
      %p330 = pneg %p96
      %p331 = pneg %p120
      %p332 = pneg %p117
      %p333 = pneg %p141
      %p334 = pneg %p138
      %p335 = pneg %p162
      %p336 = pneg %p159
      %p337 = pneg %p183
      %p338 = pneg %p180
      %p339 = pneg %p204
      %p340 = pneg %p201
      %p341 = pneg %p225
      %p342 = pneg %p222
      %p343 = pneg %p253
      %p344 = pneg %p250
      %s345 = smul.u32 2, %s27
      %p346 = scmp.lt.s32.totalorder %s26, 1
      %s347 = scalar_select %p346, %s26, 1
      %p348 = scmp.lt.s32.totalorder %s345, 1
      %s349 = scalar_select %p348, %s345, 1
      %s350 = smul.addr %s347, 2
      %s351 = sadd.s32 %s349, %s350
      %s352 = scalar_lea.vmem %s9, %s351
      %s353 = smul.u32 2, %s27
      %p354 = scmp.lt.s32.totalorder %s26, 1
      %s355 = scalar_select %p354, %s26, 1
      %p356 = scmp.lt.s32.totalorder %s353, 1
      %s357 = scalar_select %p356, %s353, 1
      %s358 = smul.addr %s355, 2
      %s359 = sadd.s32 %s357, %s358
      %s360 = smul.addr %s359, 8
      %s361 = scalar_lea.vmem %s0, %s360
      %s362 = smul.u32 2, %s27
      %s363 = smul.u32 2, %s27
      %p364 = scmp.lt.s32.totalorder %s26, 1
      %s365 = scalar_select %p364, %s26, 1
      %p366 = scmp.lt.s32.totalorder %s363, 1
      %s367 = scalar_select %p366, %s363, 1
      %s368 = smul.addr %s365, 2
      %s369 = sadd.s32 %s367, %s368
      %s370 = scalar_lea.vmem %s9, %s369
      %s371 = smul.u32 2, %s27
      %v372 = vld [vmem:[%s361] sm:$0xff]
      %v373 = vld [vmem:[%s361 + $0x8] sm:$0xff]
      %v374 = vld [vmem:[%s1] sm:$0xff]
      %v375 = vld [vmem:[%s1 + $0x8] sm:$0xff]
      %v376 = vld [vmem:[%s1 + $0x10] sm:$0xff]
      %v377 = vld [vmem:[%s1 + $0x18] sm:$0xff]
      %v378 = vld [vmem:[%s1 + $0x20] sm:$0xff]
      %v379 = vld [vmem:[%s1 + $0x28] sm:$0xff]
      %v380 = vld [vmem:[%s1 + $0x30] sm:$0xff]
      %v381 = vld [vmem:[%s1 + $0x38] sm:$0xff]
      %v382 = vld [vmem:[%s1 + $0x40] sm:$0xff]
      %v383 = vld [vmem:[%s1 + $0x48] sm:$0xff]
      %v384 = vld [vmem:[%s1 + $0x50] sm:$0xff]
      %v385 = vld [vmem:[%s1 + $0x58] sm:$0xff]
      %v386 = vld [vmem:[%s1 + $0x60] sm:$0xff]
      %v387 = vld [vmem:[%s1 + $0x68] sm:$0xff]
      %v388 = vld [vmem:[%s1 + $0x70] sm:$0xff]
      %v389 = vld [vmem:[%s1 + $0x78] sm:$0xff]
      %v390 = vld [vmem:[%s2] sm:$0xff]
      %v391 = vld [vmem:[%s2 + $0x8] sm:$0xff]
      %v392 = vld [vmem:[%s2 + $0x10] sm:$0xff]
      %v393 = vld [vmem:[%s2 + $0x18] sm:$0xff]
      %v394 = vld [vmem:[%s2 + $0x20] sm:$0xff]
      %v395 = vld [vmem:[%s2 + $0x28] sm:$0xff]
      %v396 = vld [vmem:[%s2 + $0x30] sm:$0xff]
      %v397 = vld [vmem:[%s2 + $0x38] sm:$0xff]
      %v398 = vld [vmem:[%s2 + $0x40] sm:$0xff]
      %v399 = vld [vmem:[%s2 + $0x48] sm:$0xff]
      %v400 = vld [vmem:[%s2 + $0x50] sm:$0xff]
      %v401 = vld [vmem:[%s2 + $0x58] sm:$0xff]
      %v402 = vld [vmem:[%s2 + $0x60] sm:$0xff]
      %v403 = vld [vmem:[%s2 + $0x68] sm:$0xff]
      %v404 = vld [vmem:[%s2 + $0x70] sm:$0xff]
      %v405 = vld [vmem:[%s2 + $0x78] sm:$0xff]
      %407 = vset.pattern.permute.xlu0 0
      %408 = vperm.xlu0 %407, %v390
      %v409 = vpop.permute.xlu0 %408
      %412 = vset.pattern.permute.xlu0 0
      %413 = vperm.xlu0 %412, %v391
      %v414 = vpop.permute.xlu0 %413
      %417 = vset.pattern.permute.xlu0 0
      %418 = vperm.xlu0 %417, %v392
      %v419 = vpop.permute.xlu0 %418
      %422 = vset.pattern.permute.xlu0 0
      %423 = vperm.xlu0 %422, %v393
      %v424 = vpop.permute.xlu0 %423
      %427 = vset.pattern.permute.xlu0 0
      %428 = vperm.xlu0 %427, %v394
      %v429 = vpop.permute.xlu0 %428
      %432 = vset.pattern.permute.xlu0 0
      %433 = vperm.xlu0 %432, %v395
      %v434 = vpop.permute.xlu0 %433
      %437 = vset.pattern.permute.xlu0 0
      %438 = vperm.xlu0 %437, %v396
      %v439 = vpop.permute.xlu0 %438
      %442 = vset.pattern.permute.xlu0 0
      %443 = vperm.xlu0 %442, %v397
      %v444 = vpop.permute.xlu0 %443
      %447 = vset.pattern.permute.xlu0 0
      %448 = vperm.xlu0 %447, %v398
      %v449 = vpop.permute.xlu0 %448
      %452 = vset.pattern.permute.xlu0 0
      %453 = vperm.xlu0 %452, %v399
      %v454 = vpop.permute.xlu0 %453
      %457 = vset.pattern.permute.xlu0 0
      %458 = vperm.xlu0 %457, %v400
      %v459 = vpop.permute.xlu0 %458
      %462 = vset.pattern.permute.xlu0 0
      %463 = vperm.xlu0 %462, %v401
      %v464 = vpop.permute.xlu0 %463
      %467 = vset.pattern.permute.xlu0 0
      %468 = vperm.xlu0 %467, %v402
      %v469 = vpop.permute.xlu0 %468
      %472 = vset.pattern.permute.xlu0 0
      %473 = vperm.xlu0 %472, %v403
      %v474 = vpop.permute.xlu0 %473
      %477 = vset.pattern.permute.xlu0 0
      %478 = vperm.xlu0 %477, %v404
      %v479 = vpop.permute.xlu0 %478
      %482 = vset.pattern.permute.xlu0 0
      %483 = vperm.xlu0 %482, %v405
      %v484 = vpop.permute.xlu0 %483
      %vm486 = vcmask 64512
      %v488 = vsel %vm486, %v374, 0
      %v491 = vsel %vm486, %v375, 0
      %v494 = vsel %vm486, %v376, 0
      %v497 = vsel %vm486, %v377, 0
      %v500 = vsel %vm486, %v378, 0
      %v503 = vsel %vm486, %v379, 0
      %v506 = vsel %vm486, %v380, 0
      %v509 = vsel %vm486, %v381, 0
      %v512 = vsel %vm486, %v382, 0
      %v515 = vsel %vm486, %v383, 0
      %v518 = vsel %vm486, %v384, 0
      %v521 = vsel %vm486, %v385, 0
      %v524 = vsel %vm486, %v386, 0
      %v527 = vsel %vm486, %v387, 0
      %v530 = vsel %vm486, %v388, 0
      %v533 = vsel %vm486, %v389, 0
      %535 = vmatprep.subr.mxu0 %v373
      %536 = vmatpush1.msra.mxu0 %v372
      %537 = vmatprep.subr.mxu0 0.0
      %538 = vmatpush1.msra.mxu0 0.0
      %539 = vmatprep.subr.mxu0 0.0
      %540 = vmatpush1.msra.mxu0 0.0
      %541 = vmatprep.subr.mxu0 0.0
      %542 = vmatpush1.msra.mxu0 0.0
      %543 = vmatprep.subr.mxu0 0.0
      %544 = vmatpush1.msra.mxu0 0.0
      %545 = vmatprep.subr.mxu0 0.0
      %546 = vmatpush1.msra.mxu0 0.0
      %547 = vmatprep.subr.mxu0 0.0
      %548 = vmatpush1.msra.mxu0 0.0
      %549 = vmatprep.subr.mxu0 0.0
      %550 = vmatpush1.msra.mxu0 0.0
      %551 = vmatprep.subr.mxu0 0.0
      %552 = vmatpush1.msra.mxu0 0.0
      %553 = vmatprep.subr.mxu0 0.0
      %554 = vmatpush1.msra.mxu0 0.0
      %555 = vmatprep.subr.mxu0 0.0
      %556 = vmatpush1.msra.mxu0 0.0
      %557 = vmatprep.subr.mxu0 0.0
      %558 = vmatpush1.msra.mxu0 0.0
      %559 = vmatprep.subr.mxu0 0.0
      %560 = vmatpush1.msra.mxu0 0.0
      %561 = vmatprep.subr.mxu0 0.0
      %562 = vmatpush1.msra.mxu0 0.0
      %563 = vmatprep.subr.mxu0 0.0
      %564 = vmatpush1.msra.mxu0 0.0
      %565 = vmatprep.subr.mxu0 0.0
      %566 = vmatpush1.msra.mxu0 0.0
      %567 = vmatprep.subr.mxu0 0.0
      %568 = vmatpush1.msra.mxu0 0.0
      %569 = vmatprep.subr.mxu0 0.0
      %570 = vmatpush1.msra.mxu0 0.0
      %571 = vmatprep.subr.mxu0 0.0
      %572 = vmatpush1.msra.mxu0 0.0
      %573 = vmatprep.subr.mxu0 0.0
      %574 = vmatpush1.msra.mxu0 0.0
      %575 = vmatprep.subr.mxu0 0.0
      %576 = vmatpush1.msra.mxu0 0.0
      %577 = vmatprep.subr.mxu0 0.0
      %578 = vmatpush1.msra.mxu0 0.0
      %579 = vmatprep.subr.mxu0 0.0
      %580 = vmatpush1.msra.mxu0 0.0
      %581 = vmatprep.subr.mxu0 0.0
      %582 = vmatpush1.msra.mxu0 0.0
      %583 = vmatprep.subr.mxu0 0.0
      %584 = vmatpush1.msra.mxu0 0.0
      %585 = vmatprep.subr.mxu0 0.0
      %586 = vmatpush1.msra.mxu0 0.0
      %587 = vmatprep.subr.mxu0 0.0
      %588 = vmatpush1.msra.mxu0 0.0
      %589 = vmatprep.subr.mxu0 0.0
      %590 = vmatpush1.msra.mxu0 0.0
      %591 = vmatprep.subr.mxu0 0.0
      %592 = vmatpush1.msra.mxu0 0.0
      %593 = vmatprep.subr.mxu0 0.0
      %594 = vmatpush1.msra.mxu0 0.0
      %595 = vmatprep.subr.mxu0 0.0
      %596 = vmatpush1.msra.mxu0 0.0
      %597 = vmatprep.subr.mxu0 0.0
      %598 = vmatpush1.msra.mxu0 0.0
      %599 = vmatprep.mubr.f32.mxu0 0.0
      %600 = vmatmul.mubr.f32.gmra.mrb[0].mxu0 %v488
      %v601 = vpop.f32.mrb[0].mxu0
      %v602 = vadd.f32 %v409, %v601
      %v603 = vpop.f32.mrb[0].mxu0
      %v604 = vadd.f32 %v409, %v603
      %605 = vmatprep.mubr.f32.mxu0 0.0
      %606 = vmatmul.mubr.f32.gmra.mrb[0].mxu0 %v491
      %v607 = vpop.f32.mrb[0].mxu0
      %v608 = vadd.f32 %v414, %v607
      %v609 = vpop.f32.mrb[0].mxu0
      %v610 = vadd.f32 %v414, %v609
      %611 = vmatprep.mubr.f32.mxu0 0.0
      %612 = vmatmul.mubr.f32.gmra.mrb[0].mxu0 %v494
      %v613 = vpop.f32.mrb[0].mxu0
      %v614 = vadd.f32 %v419, %v613
      %v615 = vpop.f32.mrb[0].mxu0
      %v616 = vadd.f32 %v419, %v615
      %617 = vmatprep.mubr.f32.mxu0 0.0
      %618 = vmatmul.mubr.f32.gmra.mrb[0].mxu0 %v497
      %v619 = vpop.f32.mrb[0].mxu0
      %v620 = vadd.f32 %v424, %v619
      %v621 = vpop.f32.mrb[0].mxu0
      %v622 = vadd.f32 %v424, %v621
      %623 = vmatprep.mubr.f32.mxu0 0.0
      %624 = vmatmul.mubr.f32.gmra.mrb[0].mxu0 %v500
      %v625 = vpop.f32.mrb[0].mxu0
      %v626 = vadd.f32 %v429, %v625
      %v627 = vpop.f32.mrb[0].mxu0
      %v628 = vadd.f32 %v429, %v627
      %629 = vmatprep.mubr.f32.mxu0 0.0
      %630 = vmatmul.mubr.f32.gmra.mrb[0].mxu0 %v503
      %v631 = vpop.f32.mrb[0].mxu0
      %v632 = vadd.f32 %v434, %v631
      %v633 = vpop.f32.mrb[0].mxu0
      %v634 = vadd.f32 %v434, %v633
      %635 = vmatprep.mubr.f32.mxu0 0.0
      %636 = vmatmul.mubr.f32.gmra.mrb[0].mxu0 %v506
      %v637 = vpop.f32.mrb[0].mxu0
      %v638 = vadd.f32 %v439, %v637
      %v639 = vpop.f32.mrb[0].mxu0
      %v640 = vadd.f32 %v439, %v639
      %641 = vmatprep.mubr.f32.mxu0 0.0
      %642 = vmatmul.mubr.f32.gmra.mrb[0].mxu0 %v509
      %v643 = vpop.f32.mrb[0].mxu0
      %v644 = vadd.f32 %v444, %v643
      %v645 = vpop.f32.mrb[0].mxu0
      %v646 = vadd.f32 %v444, %v645
      %647 = vmatprep.mubr.f32.mxu0 0.0
      %648 = vmatmul.mubr.f32.gmra.mrb[0].mxu0 %v512
      %v649 = vpop.f32.mrb[0].mxu0
      %v650 = vadd.f32 %v449, %v649
      %v651 = vpop.f32.mrb[0].mxu0
      %v652 = vadd.f32 %v449, %v651
      %653 = vmatprep.mubr.f32.mxu0 0.0
      %654 = vmatmul.mubr.f32.gmra.mrb[0].mxu0 %v515
      %v655 = vpop.f32.mrb[0].mxu0
      %v656 = vadd.f32 %v454, %v655
      %v657 = vpop.f32.mrb[0].mxu0
      %v658 = vadd.f32 %v454, %v657
      %659 = vmatprep.mubr.f32.mxu0 0.0
      %660 = vmatmul.mubr.f32.gmra.mrb[0].mxu0 %v518
      %v661 = vpop.f32.mrb[0].mxu0
      %v662 = vadd.f32 %v459, %v661
      %v663 = vpop.f32.mrb[0].mxu0
      %v664 = vadd.f32 %v459, %v663
      %665 = vmatprep.mubr.f32.mxu0 0.0
      %666 = vmatmul.mubr.f32.gmra.mrb[0].mxu0 %v521
      %v667 = vpop.f32.mrb[0].mxu0
      %v668 = vadd.f32 %v464, %v667
      %v669 = vpop.f32.mrb[0].mxu0
      %v670 = vadd.f32 %v464, %v669
      %671 = vmatprep.mubr.f32.mxu0 0.0
      %672 = vmatmul.mubr.f32.gmra.mrb[0].mxu0 %v524
      %v673 = vpop.f32.mrb[0].mxu0
      %v674 = vadd.f32 %v469, %v673
      %v675 = vpop.f32.mrb[0].mxu0
      %v676 = vadd.f32 %v469, %v675
      %677 = vmatprep.mubr.f32.mxu0 0.0
      %678 = vmatmul.mubr.f32.gmra.mrb[0].mxu0 %v527
      %v679 = vpop.f32.mrb[0].mxu0
      %v680 = vadd.f32 %v474, %v679
      %v681 = vpop.f32.mrb[0].mxu0
      %v682 = vadd.f32 %v474, %v681
      %683 = vmatprep.mubr.f32.mxu0 0.0
      %684 = vmatmul.mubr.f32.gmra.mrb[0].mxu0 %v530
      %v685 = vpop.f32.mrb[0].mxu0
      %v686 = vadd.f32 %v479, %v685
      %v687 = vpop.f32.mrb[0].mxu0
      %v688 = vadd.f32 %v479, %v687
      %689 = vmatprep.mubr.f32.mxu0 0.0
      %690 = vmatmul.mubr.f32.gmra.mrb[0].mxu0 %v533
      %v691 = vpop.f32.mrb[0].mxu0
      %v692 = vadd.f32 %v484, %v691
      %v693 = vpop.f32.mrb[0].mxu0
      %v694 = vadd.f32 %v484, %v693
      %695 = vdwg.mxu0
      %v696 = vmax.f32 %v602, 0.0
      %v697 = vmax.f32 %v604, 0.0
      %v698 = vmax.f32 %v608, 0.0
      %v699 = vmax.f32 %v610, 0.0
      %v700 = vmax.f32 %v614, 0.0
      %v701 = vmax.f32 %v616, 0.0
      %v702 = vmax.f32 %v620, 0.0
      %v703 = vmax.f32 %v622, 0.0
      %v704 = vmax.f32 %v626, 0.0
      %v705 = vmax.f32 %v628, 0.0
      %v706 = vmax.f32 %v632, 0.0
      %v707 = vmax.f32 %v634, 0.0
      %v708 = vmax.f32 %v638, 0.0
      %v709 = vmax.f32 %v640, 0.0
      %v710 = vmax.f32 %v644, 0.0
      %v711 = vmax.f32 %v646, 0.0
      %v712 = vmax.f32 %v650, 0.0
      %v713 = vmax.f32 %v652, 0.0
      %v714 = vmax.f32 %v656, 0.0
      %v715 = vmax.f32 %v658, 0.0
      %v716 = vmax.f32 %v662, 0.0
      %v717 = vmax.f32 %v664, 0.0
      %v718 = vmax.f32 %v668, 0.0
      %v719 = vmax.f32 %v670, 0.0
      %v720 = vmax.f32 %v674, 0.0
      %v721 = vmax.f32 %v676, 0.0
      %v722 = vmax.f32 %v680, 0.0
      %v723 = vmax.f32 %v682, 0.0
      %v724 = vmax.f32 %v686, 0.0
      %v725 = vmax.f32 %v688, 0.0
      %v726 = vmax.f32 %v692, 0.0
      %v727 = vmax.f32 %v694, 0.0
      %v728 = vld [vmem:[%s3] sm:$0xff]
      %v729 = vld [vmem:[%s3 + $0x8] sm:$0xff]
      %v730 = vld [vmem:[%s3 + $0x10] sm:$0xff]
      %v731 = vld [vmem:[%s3 + $0x18] sm:$0xff]
      %v732 = vld [vmem:[%s4] sm:$0xff]
      %v733 = vld [vmem:[%s4 + $0x8] sm:$0xff]
      %v734 = vld [vmem:[%s4 + $0x10] sm:$0xff]
      %v735 = vld [vmem:[%s4 + $0x18] sm:$0xff]
      %737 = vset.pattern.permute.xlu0 0
      %738 = vperm.xlu0 %737, %v732
      %v739 = vpop.permute.xlu0 %738
      %742 = vset.pattern.permute.xlu0 0
      %743 = vperm.xlu0 %742, %v733
      %v744 = vpop.permute.xlu0 %743
      %747 = vset.pattern.permute.xlu0 0
      %748 = vperm.xlu0 %747, %v734
      %v749 = vpop.permute.xlu0 %748
      %752 = vset.pattern.permute.xlu0 0
      %753 = vperm.xlu0 %752, %v735
      %v754 = vpop.permute.xlu0 %753
      %756 = vmatprep.subr.mxu0 %v697
      %757 = vmatpush1.msra.mxu0 %v696
      %758 = vmatprep.subr.mxu0 %v699
      %759 = vmatpush1.msra.mxu0 %v698
      %760 = vmatprep.subr.mxu0 %v701
      %761 = vmatpush1.msra.mxu0 %v700
      %762 = vmatprep.subr.mxu0 %v703
      %763 = vmatpush1.msra.mxu0 %v702
      %764 = vmatprep.subr.mxu0 %v705
      %765 = vmatpush1.msra.mxu0 %v704
      %766 = vmatprep.subr.mxu0 %v707
      %767 = vmatpush1.msra.mxu0 %v706
      %768 = vmatprep.subr.mxu0 %v709
      %769 = vmatpush1.msra.mxu0 %v708
      %770 = vmatprep.subr.mxu0 %v711
      %771 = vmatpush1.msra.mxu0 %v710
      %772 = vmatprep.subr.mxu0 %v713
      %773 = vmatpush1.msra.mxu0 %v712
      %774 = vmatprep.subr.mxu0 %v715
      %775 = vmatpush1.msra.mxu0 %v714
      %776 = vmatprep.subr.mxu0 %v717
      %777 = vmatpush1.msra.mxu0 %v716
      %778 = vmatprep.subr.mxu0 %v719
      %779 = vmatpush1.msra.mxu0 %v718
      %780 = vmatprep.subr.mxu0 %v721
      %781 = vmatpush1.msra.mxu0 %v720
      %782 = vmatprep.subr.mxu0 %v723
      %783 = vmatpush1.msra.mxu0 %v722
      %784 = vmatprep.subr.mxu0 %v725
      %785 = vmatpush1.msra.mxu0 %v724
      %786 = vmatprep.subr.mxu0 %v727
      %787 = vmatpush1.msra.mxu0 %v726
      %788 = vmatprep.subr.mxu0 0.0
      %789 = vmatpush1.msra.mxu0 0.0
      %790 = vmatprep.subr.mxu0 0.0
      %791 = vmatpush1.msra.mxu0 0.0
      %792 = vmatprep.subr.mxu0 0.0
      %793 = vmatpush1.msra.mxu0 0.0
      %794 = vmatprep.subr.mxu0 0.0
      %795 = vmatpush1.msra.mxu0 0.0
      %796 = vmatprep.subr.mxu0 0.0
      %797 = vmatpush1.msra.mxu0 0.0
      %798 = vmatprep.subr.mxu0 0.0
      %799 = vmatpush1.msra.mxu0 0.0
      %800 = vmatprep.subr.mxu0 0.0
      %801 = vmatpush1.msra.mxu0 0.0
      %802 = vmatprep.subr.mxu0 0.0
      %803 = vmatpush1.msra.mxu0 0.0
      %804 = vmatprep.subr.mxu0 0.0
      %805 = vmatpush1.msra.mxu0 0.0
      %806 = vmatprep.subr.mxu0 0.0
      %807 = vmatpush1.msra.mxu0 0.0
      %808 = vmatprep.subr.mxu0 0.0
      %809 = vmatpush1.msra.mxu0 0.0
      %810 = vmatprep.subr.mxu0 0.0
      %811 = vmatpush1.msra.mxu0 0.0
      %812 = vmatprep.subr.mxu0 0.0
      %813 = vmatpush1.msra.mxu0 0.0
      %814 = vmatprep.subr.mxu0 0.0
      %815 = vmatpush1.msra.mxu0 0.0
      %816 = vmatprep.subr.mxu0 0.0
      %817 = vmatpush1.msra.mxu0 0.0
      %818 = vmatprep.subr.mxu0 0.0
      %819 = vmatpush1.msra.mxu0 0.0
      %820 = vmatprep.mubr.f32.mxu0 0.0
      %821 = vmatmul.mubr.f32.gmra.mrb[0].mxu0 %v728
      %v822 = vpop.f32.mrb[0].mxu0
      %v823 = vadd.f32 %v739, %v822
      %v824 = vpop.f32.mrb[0].mxu0
      %v825 = vadd.f32 %v739, %v824
      %826 = vmatprep.mubr.f32.mxu0 0.0
      %827 = vmatmul.mubr.f32.gmra.mrb[0].mxu0 %v729
      %v828 = vpop.f32.mrb[0].mxu0
      %v829 = vadd.f32 %v744, %v828
      %v830 = vpop.f32.mrb[0].mxu0
      %v831 = vadd.f32 %v744, %v830
      %832 = vmatprep.mubr.f32.mxu0 0.0
      %833 = vmatmul.mubr.f32.gmra.mrb[0].mxu0 %v730
      %v834 = vpop.f32.mrb[0].mxu0
      %v835 = vadd.f32 %v749, %v834
      %v836 = vpop.f32.mrb[0].mxu0
      %v837 = vadd.f32 %v749, %v836
      %838 = vmatprep.mubr.f32.mxu0 0.0
      %839 = vmatmul.mubr.f32.gmra.mrb[0].mxu0 %v731
      %v840 = vpop.f32.mrb[0].mxu0
      %v841 = vadd.f32 %v754, %v840
      %v842 = vpop.f32.mrb[0].mxu0
      %v843 = vadd.f32 %v754, %v842
      %844 = vdwg.mxu0
      %v845 = vmax.f32 %v823, 0.0
      %v846 = vmax.f32 %v825, 0.0
      %v847 = vmax.f32 %v829, 0.0
      %v848 = vmax.f32 %v831, 0.0
      %v849 = vmax.f32 %v835, 0.0
      %v850 = vmax.f32 %v837, 0.0
      %v851 = vmax.f32 %v841, 0.0
      %v852 = vmax.f32 %v843, 0.0
      %v853 = vld [vmem:[%s5] sm:$0xff]
      %v854 = vld [vmem:[%s6] sm:$0xff]
      %856 = vset.pattern.permute.xlu0 0
      %857 = vperm.xlu0 %856, %v854
      %v858 = vpop.permute.xlu0 %857
      %vm860 = vcmask 261120
      %v862 = vsel %vm860, %v853, 0
      %864 = vmatprep.subr.mxu0 %v846
      %865 = vmatpush1.msra.mxu0 %v845
      %866 = vmatprep.subr.mxu0 %v848
      %867 = vmatpush1.msra.mxu0 %v847
      %868 = vmatprep.subr.mxu0 %v850
      %869 = vmatpush1.msra.mxu0 %v849
      %870 = vmatprep.subr.mxu0 %v852
      %871 = vmatpush1.msra.mxu0 %v851
      %872 = vmatprep.subr.mxu0 0.0
      %873 = vmatpush1.msra.mxu0 0.0
      %874 = vmatprep.subr.mxu0 0.0
      %875 = vmatpush1.msra.mxu0 0.0
      %876 = vmatprep.subr.mxu0 0.0
      %877 = vmatpush1.msra.mxu0 0.0
      %878 = vmatprep.subr.mxu0 0.0
      %879 = vmatpush1.msra.mxu0 0.0
      %880 = vmatprep.subr.mxu0 0.0
      %881 = vmatpush1.msra.mxu0 0.0
      %882 = vmatprep.subr.mxu0 0.0
      %883 = vmatpush1.msra.mxu0 0.0
      %884 = vmatprep.subr.mxu0 0.0
      %885 = vmatpush1.msra.mxu0 0.0
      %886 = vmatprep.subr.mxu0 0.0
      %887 = vmatpush1.msra.mxu0 0.0
      %888 = vmatprep.subr.mxu0 0.0
      %889 = vmatpush1.msra.mxu0 0.0
      %890 = vmatprep.subr.mxu0 0.0
      %891 = vmatpush1.msra.mxu0 0.0
      %892 = vmatprep.subr.mxu0 0.0
      %893 = vmatpush1.msra.mxu0 0.0
      %894 = vmatprep.subr.mxu0 0.0
      %895 = vmatpush1.msra.mxu0 0.0
      %896 = vmatprep.subr.mxu0 0.0
      %897 = vmatpush1.msra.mxu0 0.0
      %898 = vmatprep.subr.mxu0 0.0
      %899 = vmatpush1.msra.mxu0 0.0
      %900 = vmatprep.subr.mxu0 0.0
      %901 = vmatpush1.msra.mxu0 0.0
      %902 = vmatprep.subr.mxu0 0.0
      %903 = vmatpush1.msra.mxu0 0.0
      %904 = vmatprep.subr.mxu0 0.0
      %905 = vmatpush1.msra.mxu0 0.0
      %906 = vmatprep.subr.mxu0 0.0
      %907 = vmatpush1.msra.mxu0 0.0
      %908 = vmatprep.subr.mxu0 0.0
      %909 = vmatpush1.msra.mxu0 0.0
      %910 = vmatprep.subr.mxu0 0.0
      %911 = vmatpush1.msra.mxu0 0.0
      %912 = vmatprep.subr.mxu0 0.0
      %913 = vmatpush1.msra.mxu0 0.0
      %914 = vmatprep.subr.mxu0 0.0
      %915 = vmatpush1.msra.mxu0 0.0
      %916 = vmatprep.subr.mxu0 0.0
      %917 = vmatpush1.msra.mxu0 0.0
      %918 = vmatprep.subr.mxu0 0.0
      %919 = vmatpush1.msra.mxu0 0.0
      %920 = vmatprep.subr.mxu0 0.0
      %921 = vmatpush1.msra.mxu0 0.0
      %922 = vmatprep.subr.mxu0 0.0
      %923 = vmatpush1.msra.mxu0 0.0
      %924 = vmatprep.subr.mxu0 0.0
      %925 = vmatpush1.msra.mxu0 0.0
      %926 = vmatprep.subr.mxu0 0.0
      %927 = vmatpush1.msra.mxu0 0.0
      %928 = vmatprep.mubr.f32.mxu0 0.0
      %929 = vmatmul.mubr.f32.gmra.mrb[0].mxu0 %v862
      %v930 = vpop.f32.mrb[0].mxu0
      %v931 = vadd.f32 %v858, %v930
      %v932 = vpop.f32.mrb[0].mxu0
      %v933 = vadd.f32 %v858, %v932
      %934 = vdwg.mxu0
      %v935 = vmax.f32 %v931, 0.0
      %v936 = vmax.f32 %v933, 0.0
      %v937 = vld [vmem:[%s7] sm:$0xff]
      %939 = vset.pattern.permute.xlu0 0
      %940 = vperm.xlu0 %939, %v937
      %v941 = vpop.permute.xlu0 %940
      %v943 = vmul.f32 %v941, %v935
      %v944 = vmul.f32 %v941, %v936
      %v945 = vrot.slane %v943, 4
      %v946 = vadd.f32 %v943, %v945
      %v947 = vrot.slane %v946, 2
      %v948 = vadd.f32 %v946, %v947
      %v949 = vrot.slane %v948, 1
      %v950 = vadd.f32 %v948, %v949
      %v951 = vrot.slane %v944, 4
      %v952 = vadd.f32 %v944, %v951
      %v953 = vrot.slane %v952, 2
      %v954 = vadd.f32 %v952, %v953
      %v955 = vrot.slane %v954, 1
      %v956 = vadd.f32 %v954, %v955
      %v957 = vld [vmem:[#allocation2] sm:$0x1]
      %959 = vset.pattern.permute.xlu0 0
      %960 = vperm.xlu0 %959, %v957
      %v961 = vpop.permute.xlu0 %960
      %v963 = vlaneseq
      %v964 = vshrl.u32 %v963, 7
      %v965 = vsub.s32 0, %v964
      %v966 = vrot.slane %v961, %v965
      %v967 = vadd.f32 %v950, %v966
      %v968 = vadd.f32 %v956, %v966
      %v969 = vmax.f32 %v967, 0.0
      %v970 = vmax.f32 %v968, 0.0
      %v973 = vcombine.low %v969, %v970
      %v975 = vunpack.c.l.s4 1966171168
      %v976 = vunpack.c.0.s8 %v975
      %v977 = vlaneseq
      %v978 = vshrl.u32 %v977, 7
      %v979 = vsub.s32 %v976, %v978
      %v980 = vrot.slane %v973, %v979
      %v982 = vunpack.c.l.s4 1966171168
      %v983 = vunpack.c.0.s8 %v982
      %v984 = vlaneseq
      %v985 = vshrl.u32 %v984, 7
      %v986 = vsub.s32 %v983, %v985
      %v987 = vrot.slane %v980, %v986
      %v989 = vlaneseq
      %vm990 = vcmp.ge.s32.totalorder %v989, 0
      %vm991 = vcmp.lt.s32.totalorder %v989, 256
      %vm992 = vmand %vm990, %vm991
      %993 = vst.msk [vmem:[%s370] sm:$0x3] %vm992, %v987
      %s994 = smul.u32 2, %s27
      %p995 = scmp.lt.s32.totalorder %s26, 1
      %s996 = scalar_select %p995, %s26, 1
      %p997 = scmp.lt.s32.totalorder %s994, 1
      %s998 = scalar_select %p997, %s994, 1
      %s999 = smul.addr %s996, 2
      %s1000 = sadd.s32 %s998, %s999
      %s1001 = scalar_lea.vmem %s9, %s1000
      // Predicated region
      $region57: #{pixel_weight_layer.1} parent=55 // pred_check
        %p1002 = pneg %p250
      $region58: #{pixel_weight_layer.1} parent=55 // pred_check_branch
        %1004 = sbr.rel (%p1002) target = $region60
      $region59: #{pixel_weight_layer.1} parent=55 // pred_region
        %s1005 = smul.u32 2, %s27
      $region60: #{pixel_weight_layer.1} parent=55 // pred_fallthru
        _
    $region56: #{pixel_weight_layer.1} parent=5 // pred_fallthru
      _
    %p1006 = scmp.le.s32.totalorder 2, %s17
    // Predicated region
    $region61: #{pixel_weight_layer.1} parent=5 // pred_check
      %p1007 = pneg %p1006
    $region62: #{pixel_weight_layer.1} parent=5 // pred_check_branch
      %1009 = sbr.rel (%p1007) target = $region64
    $region63: #{pixel_weight_layer.1} parent=5 // pred_region
      %s1010 = ssub.s32 %s17, 2
      // Predicated region
      $region65: #{pixel_weight_layer.1} parent=63 // pred_check
        %p1011 = pneg %p256
      $region66: #{pixel_weight_layer.1} parent=63 // pred_check_branch
        %1013 = sbr.rel (%p1011) target = $region68
      $region67: #{pixel_weight_layer.1} parent=63 // pred_region
        %s1014 = smul.u32 2, %s29
        %p1015 = scmp.lt.s32.totalorder %s28, 1
        %s1016 = scalar_select %p1015, %s28, 1
        %p1017 = scmp.lt.s32.totalorder %s1014, 1
        %s1018 = scalar_select %p1017, %s1014, 1
        %s1019 = smul.addr %s1016, 2
        %s1020 = sadd.s32 %s1018, %s1019
        %s1021 = scalar_lea.vmem %s9, %s1020
      $region68: #{pixel_weight_layer.1} parent=63 // pred_fallthru
        _
    $region64: #{pixel_weight_layer.1} parent=5 // pred_fallthru
      _
  $region6: #{pixel_weight_layer.1} parent=0 // loop_footer
    %s21 = sadd.s32 1, %s17
  $region7: #{pixel_weight_layer.1} parent=0 // loop_footer_branch
    %16 = sbr.rel target = $region3
  $region8: #{pixel_weight_layer.1} parent=0 // loop_exit
    _

</llo_original>
